<compile_context>
chip_gen: v6e
topology: v6e:2x2x1
jax: 0.10.0
libtpu: 0.0.40
codegen_flags: <defaults>
</compile_context>

<pallas_src>
import jax
import jax.numpy as jnp
from jax.experimental import pallas as pl
from jax.experimental.pallas import tpu as pltpu


def value_head_kernel(x_ref, w_ref, b_ref, o_ref):
    """One batch tile of the value head.

    x_ref: (TB, N*E) source dtype (bf16/f32) -- flattened encoding tile
    w_ref: (1,  N*E) f32  -- projection weight, pre-scaled by 1/N, tiled over N
    b_ref: (1,)      f32  -- bias scalar in SMEM
    o_ref: (TB, 1)   f32  -- tanh(mean-pool(x) . w + b) per row
    """
    x = x_ref[...].astype(jnp.float32)               # upcast right after load (VPU)
    prod = x * w_ref[...]                            # VPU multiply, row broadcast
    logit = jnp.sum(prod, axis=-1, keepdims=True)    # XLU lane reduce -> (TB, 1)
    o_ref[...] = jnp.tanh(logit + b_ref[0])          # EUP tanh, scalar bias, tiny store


def _pick_batch_tile(batch, row_bytes, target_block_bytes=4 << 20, max_rows=8192):
    """Batch tile: ~4 MiB input blocks, capped row count, megacore-friendly."""
    tb = max(1, target_block_bytes // max(row_bytes, 1))
    tb = min(tb, max_rows)
    if tb >= batch:
        # One block would cover the whole batch.  If the batch is big enough,
        # split it in two so ("parallel",) can shard across v7x's two TCs.
        if batch >= 64:
            half = (((batch + 1) // 2) + 31) // 32 * 32
            if half < batch:
                return half
        return batch
    # Tiled case: keep sublane packing alignment for f32/bf16/int8 inputs.
    return max(32, (tb // 32) * 32)


def value_net_forward(x, w, b):
    """x: (B, D1, ..., Dk, E) -> (B, 1).  Keeps x's dtype for the HBM DMA."""
    B = x.shape[0]
    E = x.shape[-1]
    n_pos = 1
    for d in x.shape[1:-1]:
        n_pos *= d
    NE = n_pos * E

    # Flatten spatial dims into the lane axis: (B, N*E) -> every vector
    # load/op is lane-dense even for small E.
    x_flat = x.reshape(B, NE)

    # Fold the mean's 1/N into the weight and tile it across the N positions so
    # mean_n(x) . w becomes a single elementwise multiply + lane reduce.
    w_flat = jnp.asarray(w, jnp.float32).reshape(-1)              # (E,)
    w_full = (jnp.tile(w_flat, n_pos) / jnp.float32(n_pos)).reshape(1, NE)
    b_arr = jnp.asarray(b, jnp.float32).reshape(1)                # (1,) SMEM scalar

    tb = _pick_batch_tile(B, NE * x_flat.dtype.itemsize)
    num_tiles = pl.cdiv(B, tb)
    grid = (num_tiles,)
    # Output is padded to a whole number of tiles (divisible blocks); rows >= B
    # come from the garbage tail of the last (partial) input block and are
    # sliced away below.  No host-side pad of x is needed.
    out_rows = num_tiles * tb

    # VMEM budget: double-buffered input tiles + weight row + f32 intermediates
    # created by the in-kernel upcast/product + lane-padded (tb,1) out buffers
    # + headroom.  Floor 16 MiB, cap 48 MiB (leave v7x compiler scratch room).
    need = (2 * tb * NE * x_flat.dtype.itemsize
            + 2 * NE * 4
            + 2 * tb * NE * 4
            + 2 * tb * 128 * 4
            + (2 << 20))
    vmem_limit = int(min(max(need, 16 << 20), 48 << 20))

    out = pl.pallas_call(
        value_head_kernel,
        out_shape=jax.ShapeDtypeStruct((out_rows, 1), jnp.float32),
        grid=grid,
        in_specs=[
            pl.BlockSpec((tb, NE), lambda i: (i, 0)),              # x batch tile
            pl.BlockSpec((1, NE), lambda i: (0, 0)),               # weight (resident)
            pl.BlockSpec(memory_space=pltpu.MemorySpace.SMEM),     # bias scalar
        ],
        out_specs=pl.BlockSpec((tb, 1), lambda i: (i, 0)),
        compiler_params=pltpu.CompilerParams(
            dimension_semantics=("parallel",),
            vmem_limit_bytes=vmem_limit,
        ),
    )(x_flat, w_full, b_arr)

    # Drop any padded tail rows -> documented (B, 1) contract.
    return out[:B]


if __name__ == "__main__":
    # (batch, D1, D2, embedding_dim) = (2, 4, 4, 32), consistent with the
    # module's (batch, D1, ..., Dk, E) -> (batch, 1) contract.
    B, D1, D2, E = 2, 4, 4, 32
    key = jax.random.PRNGKey(0)
    kx, kw, kb = jax.random.split(key, 3)

    # bf16 input: stream half the bytes HBM->VMEM; upcast to f32 in-kernel.
    x = jax.random.normal(kx, (B, D1, D2, E), dtype=jnp.float32).astype(jnp.bfloat16)
    w = jax.random.normal(kw, (E, 1), dtype=jnp.float32) / jnp.sqrt(jnp.float32(E))
    b = jax.random.normal(kb, (1,), dtype=jnp.float32) * 0.01

    out = jax.block_until_ready(value_net_forward(x, w, b))

    # Pure-JAX reference (same bf16 data, f32 math): mean-pool -> linear -> tanh.
    xf = x.astype(jnp.float32)
    ref = jnp.tanh(jnp.mean(xf.reshape(B, -1, E), axis=1) @ w + b[0])
    assert out.shape == (B, 1), out.shape
    assert jnp.allclose(out, ref, atol=1e-4, rtol=1e-4), (out, ref)

    print("KERNEL_OK")
</pallas_src>

<mosaic_0001>
module attributes {stable_mosaic.version = 11 : i64} {
  func.func @value_head_kernel(%arg0: i32, %arg1: memref<2x512xbf16, #tpu.memory_space<vmem>>, %arg2: memref<1x512xf32, #tpu.memory_space<vmem>>, %arg3: memref<1xf32, #tpu.memory_space<smem>>, %arg4: memref<2x1xf32, #tpu.memory_space<vmem>>) attributes {dimension_semantics = [#tpu.dimension_semantics<parallel>], iteration_bounds = array<i64: 1>, scalar_prefetch = 0 : i64, scratch_operands = 0 : i64, tpu.core_type = #tpu.core_type<tc>, window_params = [{transform_indices = @transform_0, window_bounds = array<i64: 2, 512>}, {pipeline_mode = #tpu.pipeline_mode<synchronous>, transform_indices = @transform_1, window_bounds = array<i64: 1, 512>}, {transform_indices = @transform_2, window_bounds = array<i64: 1>}, {transform_indices = @transform_3, window_bounds = array<i64: 2, 1>}]} {
    %c0 = arith.constant 0 : index
    %c0_0 = arith.constant 0 : index
    %0 = vector.load %arg1[%c0, %c0_0] : memref<2x512xbf16, #tpu.memory_space<vmem>>, vector<2x512xbf16>
    %1 = arith.extf %0 : vector<2x512xbf16> to vector<2x512xf32>
    %c0_1 = arith.constant 0 : index
    %c0_2 = arith.constant 0 : index
    %2 = vector.load %arg2[%c0_1, %c0_2] : memref<1x512xf32, #tpu.memory_space<vmem>>, vector<1x512xf32>
    %3 = vector.broadcast %2 : vector<1x512xf32> to vector<2x512xf32>
    %4 = arith.mulf %1, %3 : vector<2x512xf32>
    %cst = arith.constant dense<0.000000e+00> : vector<2xf32>
    %5 = vector.multi_reduction <add>, %4, %cst [1] : vector<2x512xf32> to vector<2xf32>
    %6 = vector.shape_cast %5 : vector<2xf32> to vector<2x1xf32>
    %c0_3 = arith.constant 0 : index
    %7 = memref.load %arg3[%c0_3] : memref<1xf32, #tpu.memory_space<smem>>
    %8 = vector.broadcast %7 : f32 to vector<2x1xf32>
    %9 = arith.addf %6, %8 : vector<2x1xf32>
    %10 = math.tanh %9 : vector<2x1xf32>
    %c0_4 = arith.constant 0 : index
    %c0_5 = arith.constant 0 : index
    %11 = vector.load %arg4[%c0_4, %c0_5] : memref<2x1xf32, #tpu.memory_space<vmem>>, vector<2x1xf32>
    tpu.vector_store %arg4[%c0_4, %c0_5], %10 {strides = array<i32>} : memref<2x1xf32, #tpu.memory_space<vmem>>, vector<2x1xf32>,
    return
  }
  func.func @transform_0(%arg0: i32) -> (i32, i32) {
    %c0_i32 = arith.constant 0 : i32
    %c0_i32_0 = arith.constant 0 : i32
    return %arg0, %c0_i32 : i32, i32
  }
  func.func @transform_1(%arg0: i32) -> (i32, i32) {
    %c0_i32 = arith.constant 0 : i32
    %c0_i32_0 = arith.constant 0 : i32
    %c0_i32_1 = arith.constant 0 : i32
    return %c0_i32, %c0_i32_0 : i32, i32
  }
  func.func @transform_2(%arg0: i32) -> i32 {
    %c0_i32 = arith.constant 0 : i32
    %c0_i32_0 = arith.constant 0 : i32
    return %c0_i32 : i32
  }
  func.func @transform_3(%arg0: i32) -> (i32, i32) {
    %c0_i32 = arith.constant 0 : i32
    %c0_i32_0 = arith.constant 0 : i32
    return %arg0, %c0_i32 : i32, i32
  }
}

</mosaic_0001>

<llo_original>
// kernel: tpu_custom_call.1
$region0: #{tpu_custom_call.1}
  #allocation0 [shape = 'u32[]', space=smem, size = 0x4, offset = 0x4, fixed_abs, tag = 'smem constant byte address 0x4 - core index']
  #allocation1 [shape = 'u32[144,128]{1,0:T(1,128)}', space=vmem, size = 0x12000, scoped, tag = 'internal scratch']
  #allocation2 [shape = 'f32[1]{0:T(128)S(6)}', space=smem, size = 0x200, scoped, tag = 'scoped memory for tpu_custom_call.1']
  %s0 = inlined_call_operand.hbm [shape: bf16[2,512], index: 0, kind: input, shape index: {}]
  %s1 = inlined_call_operand.hbm [shape: f32[1,512], index: 1, kind: input, shape index: {}]
  %s2 = inlined_call_operand.<no memory space> [shape: f32[1], index: 2, kind: input, shape index: {}]
  %s3 = inlined_call_operand.vmem [shape: f32[2,1], index: 3, kind: output, shape index: {}]
  %s4 = sld [smem:[#allocation0]]
  $region30: #{tpu_custom_call.1} parent=0
    _
  %s6 = ssub.s32 1, %s4
  %s7 = scalar_select 0, %s6, %s4
  %8 = sst [smem:[#allocation2]] %s2
  $region1: #{tpu_custom_call.1} parent=0
    #allocation3 [shape = 'u8[2048]{0}', space=vmem, size = 0x800, scoped, tag = 'input window, operand 0, single buffered']
    #allocation4 [shape = 's32[1]{0}', space=sflag, size = 0x4, scoped, tag = 'scoped memory for tpu_custom_call.1']
    #allocation5 [shape = 'u8[2048]{0}', space=vmem, size = 0x800, scoped, tag = 'input window, operand 1, single buffered']
    #allocation6 [shape = 's32[1]{0}', space=sflag, size = 0x4, scoped, tag = 'scoped memory for tpu_custom_call.1']
    %9 = vsyncpa [#allocation4], 0
    %10 = vsyncpa [#allocation6], 0
    // Predicated region
    $region2: #{tpu_custom_call.1} parent=1 // pred_check
      _
    $region3: #{tpu_custom_call.1} parent=1 // pred_check_branch
      %12 = sbr.rel (0) target = $region5
    $region4: #{tpu_custom_call.1} parent=1 // pred_region
      %s14 = ssub.s32 64, 64
      %15 = vsyncadd [#allocation4], %s14
      %s17 = sshll.u32 [#allocation3], 4
      %s18 = int_to_ptr.vmem [resolvable:$true] %s17
      %20 = dma.hbm_to_vmem [thread:$0]  %s0, 64, %s18, [#allocation4]
    $region5: #{tpu_custom_call.1} parent=1 // pred_fallthru
      _
    // Predicated region
    $region6: #{tpu_custom_call.1} parent=1 // pred_check
      _
    $region7: #{tpu_custom_call.1} parent=1 // pred_check_branch
      %22 = sbr.rel (0) target = $region9
    $region8: #{tpu_custom_call.1} parent=1 // pred_region
      %s24 = ssub.s32 64, 64
      %25 = vsyncadd [#allocation6], %s24
      %s27 = sshll.u32 [#allocation5], 4
      %s28 = int_to_ptr.vmem [resolvable:$true] %s27
      %30 = dma.hbm_to_vmem [thread:$0]  %s1, 64, %s28, [#allocation6]
    $region9: #{tpu_custom_call.1} parent=1 // pred_fallthru
      _
    // Predicated region
    $region10: #{tpu_custom_call.1} parent=1 // pred_check
      _
    $region11: #{tpu_custom_call.1} parent=1 // pred_check_branch
      %32 = sbr.rel (0) target = $region13
    $region12: #{tpu_custom_call.1} parent=1 // pred_region
      _
    $region13: #{tpu_custom_call.1} parent=1 // pred_fallthru
      _
    // Predicated region
    $region14: #{tpu_custom_call.1} parent=1 // pred_check
      _
    $region15: #{tpu_custom_call.1} parent=1 // pred_check_branch
      %34 = sbr.rel (0) target = $region17
    $region16: #{tpu_custom_call.1} parent=1 // pred_region
      %35 = dma.done [#allocation4], 64
    $region17: #{tpu_custom_call.1} parent=1 // pred_fallthru
      _
    // Predicated region
    $region18: #{tpu_custom_call.1} parent=1 // pred_check
      _
    $region19: #{tpu_custom_call.1} parent=1 // pred_check_branch
      %37 = sbr.rel (0) target = $region21
    $region20: #{tpu_custom_call.1} parent=1 // pred_region
      %38 = dma.done [#allocation6], 64
    $region21: #{tpu_custom_call.1} parent=1 // pred_fallthru
      _
    %v39 = vld [vmem:[#allocation3] sm:$0xf]
    %v40 = vunpack.c.l.bf16 %v39
    %v41 = vld [vmem:[#allocation5] sm:$0xf]
    %v43 = vlaneseq
    %v44 = vshrl.u32 %v43, 7
    %v45 = vsub.s32 0, %v44
    %v46 = vrot.slane %v41, %v45
    %v47 = vlaneseq
    %v48 = vshrl.u32 %v47, 7
    %v49 = vsub.s32 1, %v48
    %v50 = vrot.slane %v41, %v49
    %v51 = vlaneseq
    %v52 = vshrl.u32 %v51, 7
    %v53 = vsub.s32 2, %v52
    %v54 = vrot.slane %v41, %v53
    %v55 = vlaneseq
    %v56 = vshrl.u32 %v55, 7
    %v57 = vsub.s32 3, %v56
    %v58 = vrot.slane %v41, %v57
    %v59 = vcombine.low %v46, %v50
    %v60 = vcombine.low %v54, %v58
    %v62 = vunpack.c.l.s4 1983009808
    %v63 = vunpack.c.0.s8 %v62
    %v64 = vlaneseq
    %v65 = vshrl.u32 %v64, 7
    %v66 = vsub.s32 %v63, %v65
    %v67 = vrot.slane %v59, %v66
    %v69 = vunpack.c.l.s4 1983009808
    %v70 = vunpack.c.0.s8 %v69
    %v71 = vlaneseq
    %v72 = vshrl.u32 %v71, 7
    %v73 = vsub.s32 %v70, %v72
    %v74 = vrot.slane %v60, %v73
    %v75 = vcombine.low %v67, %v74
    %v77 = vmul.f32 %v40, %v75
    %v79 = vcombine.high %v77, %v77
    %v81 = vunpack.c.l.s4 1983009808
    %v82 = vunpack.c.0.s8 %v81
    %v83 = vlaneseq
    %v84 = vshrl.u32 %v83, 7
    %v85 = vsub.s32 %v82, %v84
    %v86 = vrot.slane %v77, %v85
    %v88 = vunpack.c.l.s4 1983009808
    %v89 = vunpack.c.0.s8 %v88
    %v90 = vlaneseq
    %v91 = vshrl.u32 %v90, 7
    %v92 = vsub.s32 %v89, %v91
    %v93 = vrot.slane %v79, %v92
    %v94 = vcombine.high %v86, %v86
    %v95 = vcombine.high %v93, %v93
    %vm100 = vcmask 1041408
    %v101 = vsel %vm100, %v86, 0.0
    %v102 = vsel %vm100, %v94, 0.0
    %v103 = vadd.f32 %v101, %v102
    %v104 = vsel %vm100, %v93, 0.0
    %v105 = vadd.f32 %v103, %v104
    %v106 = vsel %vm100, %v95, 0.0
    %v107 = vadd.f32 %v105, %v106
    %108 = vadd.xlane.f32.xlu0 %v107
    %v109 = vpop.xlane.xlu0 %108
    %s110 = sld [smem:[#allocation2]]
    %v111 = vstv %s110
    %v112 = vadd.f32 %v109, %v111
    %v113 = vtanh.pop %v112
    %vm114 = vcmask 1024
    %115 = vst.msk [vmem:[%s3] sm:$0x3] %vm114, %v113
    // Predicated region
    $region22: #{tpu_custom_call.1} parent=1 // pred_check
      _
    $region23: #{tpu_custom_call.1} parent=1 // pred_check_branch
      %117 = sbr.rel (0) target = $region25
    $region24: #{tpu_custom_call.1} parent=1 // pred_region
      _
    $region25: #{tpu_custom_call.1} parent=1 // pred_fallthru
      _
    // Predicated region
    $region26: #{tpu_custom_call.1} parent=1 // pred_check
      _
    $region27: #{tpu_custom_call.1} parent=1 // pred_check_branch
      %119 = sbr.rel (0) target = $region29
    $region28: #{tpu_custom_call.1} parent=1 // pred_region
      _
    $region29: #{tpu_custom_call.1} parent=1 // pred_fallthru
      _
    %120 = vsyncpa [#allocation4], 1
    %121 = vsyncpa [#allocation6], 1

</llo_original>
